<compile_context>
chip_gen: v7x
topology: tpu7x:2x2x1
jax: 0.10.0
libtpu: 0.0.40
codegen_flags: <defaults>
</compile_context>

<pallas_src>
import jax
import jax.numpy as jnp
from jax.experimental import pallas as pl
from jax.experimental.pallas import tpu as pltpu

NUM_NODES = 8                          # num_nodes
LENGTH = 16                            # length
TRANS_TYPE = 4                         # trans_type
INPUT_SIZE = NUM_NODES * LENGTH        # 128
HEAD_W = NUM_NODES * (1 + TRANS_TYPE)  # 8 reorder lanes + 4*8 trans lanes = 40
OUT_W = 2 * NUM_NODES                  # packed output: [reorder(8) | choice(8)] = 16

# True-f32 matmuls (multi-pass on the bf16 MXU).  Flip to DEFAULT + bf16
# params if bit-faithfulness at round()/argmax boundaries is not required.
MATMUL_PRECISION = jax.lax.Precision.HIGHEST


def net_kernel(x_ref, w1_ref, b1_ref, wh_ref, bh_ref, out_ref):
    x = x_ref[...]                                                  # (blk, 128)

    # hidden1 + leaky_relu(negative_slope=0.1)
    h = jnp.dot(x, w1_ref[...], preferred_element_type=jnp.float32,
                precision=MATMUL_PRECISION) + b1_ref[...]
    y = jnp.maximum(h, 0.1 * h)                                     # (blk, 128)

    # Single fused head matmul: lanes [0:8] = reorder logits,
    # lanes [8+8t : 16+8t] = trans logits for trans type t (t = 0..3).
    z = jnp.dot(y, wh_ref[...], preferred_element_type=jnp.float32,
                precision=MATMUL_PRECISION) + bh_ref[...]           # (blk, 40)

    # output_reorder -> relu6(.) * 50 / 6 -> round (half-to-even == torch.round)
    rz = z[:, 0:NUM_NODES]
    reorder = jnp.round(jnp.clip(rz, 0.0, 6.0) * 50.0 / 6.0)        # (blk, 8)

    # output_trans -> view(num_nodes, trans_type) -> softmax(dim=1) -> argmax.
    # softmax is strictly monotone per row, so argmax(softmax(z)) == argmax(z);
    # strict '>' keeps the first maximal index (torch.argmax tie-breaking).
    best_logit = z[:, NUM_NODES:2 * NUM_NODES]
    best_idx = jnp.zeros_like(best_logit)                           # float idx
    for t in range(1, TRANS_TYPE):
        lt = z[:, (t + 1) * NUM_NODES:(t + 2) * NUM_NODES]
        take = lt > best_logit
        best_idx = jnp.where(take, jnp.float32(t), best_idx)
        best_logit = jnp.where(take, lt, best_logit)

    # One lane-contiguous packed store: [reorder | argmax-as-float].
    out_ref[...] = jnp.concatenate([reorder, best_idx], axis=1)     # (blk, 16)


def prepare_params(params):
    """One-time parameter prep (hoisted out of the per-call hot path).

    Regroups the trans head so column (8 + t*NUM_NODES + n) of the fused head
    weight is the logit for (node n, trans type t) — matching torch's
    .view(num_nodes, trans_type) — then concatenates with the reorder head
    into a single (128, 40) weight / (1, 40) bias.
    Params stay f32 (see MATMUL_PRECISION note above).
    """
    w1, b1, wr, br, wt, bt = params
    wt_g = jnp.transpose(wt.reshape(INPUT_SIZE, NUM_NODES, TRANS_TYPE), (2, 0, 1))
    bt_g = jnp.transpose(bt.reshape(1, NUM_NODES, TRANS_TYPE), (2, 0, 1))
    w_heads = jnp.concatenate(
        [wr] + [wt_g[t] for t in range(TRANS_TYPE)], axis=1)        # (128, 40)
    b_heads = jnp.concatenate(
        [br] + [bt_g[t] for t in range(TRANS_TYPE)], axis=1)        # (1, 40)
    return (w1.astype(jnp.float32), b1.astype(jnp.float32),
            w_heads.astype(jnp.float32), b_heads.astype(jnp.float32))


def _round_up(n, m):
    return ((n + m - 1) // m) * m


def _choose_block(batch):
    """Rows per grid step: big blocks amortize the ~0.35 us/step overhead,
    but keep >= 2 steps for B > 8 so v7x's two TensorCores both get work."""
    if batch <= 8:
        # block rows == full array rows (satisfies the (8,128) rule directly)
        return batch
    return min(1024, _round_up((batch + 1) // 2, 8))


def net_forward_batched(x_rows, prepped):
    """Run the Net forward on B independent flattened samples (B, INPUT_SIZE)."""
    w1, b1, wh, bh = prepped
    B = x_rows.shape[0]
    x_flat = x_rows.reshape(B, INPUT_SIZE).astype(jnp.float32)

    blk = _choose_block(B)
    grid = pl.cdiv(B, blk)   # ragged last block: OOB reads dead, OOB writes clipped

    const = dict(pipeline_mode=pl.Buffered(1))   # weights fetched once; no 2nd buffer
    out = pl.pallas_call(
        net_kernel,
        out_shape=jax.ShapeDtypeStruct((B, OUT_W), jnp.float32),
        grid=(grid,),
        in_specs=[
            pl.BlockSpec((blk, INPUT_SIZE), lambda i: (i, 0)),               # x rows
            pl.BlockSpec((INPUT_SIZE, INPUT_SIZE), lambda i: (0, 0), **const),  # w1
            pl.BlockSpec((1, INPUT_SIZE), lambda i: (0, 0), **const),           # b1
            pl.BlockSpec((INPUT_SIZE, HEAD_W), lambda i: (0, 0), **const),      # head W
            pl.BlockSpec((1, HEAD_W), lambda i: (0, 0), **const),               # head b
        ],
        out_specs=pl.BlockSpec((blk, OUT_W), lambda i: (i, 0)),
        compiler_params=pltpu.CompilerParams(
            dimension_semantics=("parallel",)),
    )(x_flat, w1, b1, wh, bh)

    reorder = out[:, 0:NUM_NODES]                                   # (B, 8) f32
    choice = out[:, NUM_NODES:OUT_W].astype(jnp.int32)              # (B, 8) i32
    return reorder, choice


def net_forward(x, prepped):
    """Mirrors torch: x.view(1, -1) -> (reorder (1, NN) f32, trans_choice (NN,)).

    NOTE: B=1 is pure fixed overhead (launch + ~84 KiB weight DMA); batch
    requests through net_forward_batched whenever throughput matters.
    """
    reorder, choice = net_forward_batched(x.reshape(1, INPUT_SIZE), prepped)
    # torch returns trans_choice as int64; int32 here (values in [0, TRANS_TYPE)).
    return reorder, choice.reshape(NUM_NODES)


def net_reference(x_rows, prepped):
    """Pure-JAX reference (same HIGHEST-precision f32 math) for validation."""
    w1, b1, wh, bh = prepped
    x = x_rows.reshape(-1, INPUT_SIZE).astype(jnp.float32)
    h = jnp.dot(x, w1, precision=jax.lax.Precision.HIGHEST) + b1
    y = jnp.maximum(h, 0.1 * h)
    z = jnp.dot(y, wh, precision=jax.lax.Precision.HIGHEST) + bh
    reorder = jnp.round(jnp.clip(z[:, :NUM_NODES], 0.0, 6.0) * 50.0 / 6.0)
    logits_tn = z[:, NUM_NODES:].reshape(-1, TRANS_TYPE, NUM_NODES)
    choice = jnp.argmax(jnp.transpose(logits_tn, (0, 2, 1)), axis=-1).astype(jnp.int32)
    return reorder, choice


def init_params(key):
    # Deterministic replication of torch.nn.Linear default init:
    # W, b ~ U(-1/sqrt(fan_in), 1/sqrt(fan_in)); weights stored transposed
    # as (in_features, out_features).
    def linear(k, fan_in, fan_out):
        kw, kb = jax.random.split(k)
        bound = 1.0 / float(jnp.sqrt(jnp.float32(fan_in)))
        w = jax.random.uniform(kw, (fan_in, fan_out), jnp.float32, -bound, bound)
        b = jax.random.uniform(kb, (1, fan_out), jnp.float32, -bound, bound)
        return w, b

    k1, k2, k3 = jax.random.split(key, 3)
    w1, b1 = linear(k1, INPUT_SIZE, INPUT_SIZE)                     # hidden1
    wr, br = linear(k2, INPUT_SIZE, NUM_NODES)                      # output_reorder
    wt, bt = linear(k3, INPUT_SIZE, NUM_NODES * TRANS_TYPE)         # output_trans
    return w1, b1, wr, br, wt, bt


if __name__ == "__main__":
    key = jax.random.PRNGKey(0)
    kp, kx, kb = jax.random.split(key, 3)
    params = init_params(kp)
    prepped = prepare_params(params)        # one-time param prep (fused heads)

    # Single-sample path (exact PyTorch forward semantics: x.view(1, -1)).
    x = jax.random.normal(kx, (NUM_NODES, LENGTH), dtype=jnp.float32)
    reorder, trans_choice = net_forward(x, prepped)
    jax.block_until_ready((reorder, trans_choice))
    assert reorder.shape == (1, NUM_NODES) and reorder.dtype == jnp.float32
    assert trans_choice.shape == (NUM_NODES,) and trans_choice.dtype == jnp.int32
    assert bool(jnp.all(jnp.isfinite(reorder)))
    assert bool(jnp.all((trans_choice >= 0) & (trans_choice < TRANS_TYPE)))

    # Batched path: B=20 exercises a 2-step grid with a ragged final block
    # (blk=16, last block has only 4 valid rows) — no padding, no output slice.
    xb = jax.random.normal(kb, (20, NUM_NODES, LENGTH), dtype=jnp.float32)
    reorder_b, choice_b = net_forward_batched(xb, prepped)
    jax.block_until_ready((reorder_b, choice_b))
    assert reorder_b.shape == (20, NUM_NODES)
    assert choice_b.shape == (20, NUM_NODES)

    # Validate against the pure-JAX reference (same f32 HIGHEST-precision math).
    ref_reorder, ref_choice = net_reference(xb, prepped)
    assert bool(jnp.allclose(reorder_b, ref_reorder))
    assert bool(jnp.all(choice_b == ref_choice))
    ref_r1, ref_c1 = net_reference(x.reshape(1, INPUT_SIZE), prepped)
    assert bool(jnp.allclose(reorder, ref_r1))
    assert bool(jnp.all(trans_choice == ref_c1.reshape(NUM_NODES)))

    print("KERNEL_OK")
</pallas_src>

<mosaic_0001>
module attributes {stable_mosaic.version = 11 : i64} {
  func.func @net_kernel(%arg0: i32, %arg1: memref<1x128xf32, #tpu.memory_space<vmem>>, %arg2: memref<128x128xf32, #tpu.memory_space<vmem>>, %arg3: memref<1x128xf32, #tpu.memory_space<vmem>>, %arg4: memref<128x40xf32, #tpu.memory_space<vmem>>, %arg5: memref<1x40xf32, #tpu.memory_space<vmem>>, %arg6: memref<1x16xf32, #tpu.memory_space<vmem>>) attributes {dimension_semantics = [#tpu.dimension_semantics<parallel>], iteration_bounds = array<i64: 1>, scalar_prefetch = 0 : i64, scratch_operands = 0 : i64, tpu.core_type = #tpu.core_type<tc>, window_params = [{transform_indices = @transform_0, window_bounds = array<i64: 1, 128>}, {pipeline_mode = #tpu.pipeline_mode<synchronous>, transform_indices = @transform_1, window_bounds = array<i64: 128, 128>}, {pipeline_mode = #tpu.pipeline_mode<synchronous>, transform_indices = @transform_2, window_bounds = array<i64: 1, 128>}, {pipeline_mode = #tpu.pipeline_mode<synchronous>, transform_indices = @transform_3, window_bounds = array<i64: 128, 40>}, {pipeline_mode = #tpu.pipeline_mode<synchronous>, transform_indices = @transform_4, window_bounds = array<i64: 1, 40>}, {transform_indices = @transform_5, window_bounds = array<i64: 1, 16>}]} {
    %c0 = arith.constant 0 : index
    %c0_0 = arith.constant 0 : index
    %0 = vector.load %arg1[%c0, %c0_0] : memref<1x128xf32, #tpu.memory_space<vmem>>, vector<1x128xf32>
    %c0_1 = arith.constant 0 : index
    %c0_2 = arith.constant 0 : index
    %1 = vector.load %arg2[%c0_1, %c0_2] : memref<128x128xf32, #tpu.memory_space<vmem>>, vector<128x128xf32>
    %cst = arith.constant dense<0.000000e+00> : vector<1x128xf32>
    %2 = tpu.matmul %0, %1, %cst {dimension_numbers = #tpu.dot_dimension_numbers<[1], [0], [0], [1], [0, 0, 1, 1], [], []>, precision = #tpu.contract_precision<fp32>} : vector<1x128xf32>, vector<128x128xf32>, vector<1x128xf32> -> vector<1x128xf32>
    %c0_3 = arith.constant 0 : index
    %c0_4 = arith.constant 0 : index
    %3 = vector.load %arg3[%c0_3, %c0_4] : memref<1x128xf32, #tpu.memory_space<vmem>>, vector<1x128xf32>
    %4 = arith.addf %2, %3 : vector<1x128xf32>
    %cst_5 = arith.constant 1.000000e-01 : f32
    %5 = vector.broadcast %cst_5 : f32 to vector<1x128xf32>
    %6 = arith.mulf %5, %4 : vector<1x128xf32>
    %7 = arith.maximumf %4, %6 : vector<1x128xf32>
    %c0_6 = arith.constant 0 : index
    %c0_7 = arith.constant 0 : index
    %8 = vector.load %arg4[%c0_6, %c0_7] : memref<128x40xf32, #tpu.memory_space<vmem>>, vector<128x40xf32>
    %cst_8 = arith.constant dense<0.000000e+00> : vector<1x40xf32>
    %9 = tpu.matmul %7, %8, %cst_8 {dimension_numbers = #tpu.dot_dimension_numbers<[1], [0], [0], [1], [0, 0, 1, 1], [], []>, precision = #tpu.contract_precision<fp32>} : vector<1x128xf32>, vector<128x40xf32>, vector<1x40xf32> -> vector<1x40xf32>
    %c0_9 = arith.constant 0 : index
    %c0_10 = arith.constant 0 : index
    %10 = vector.load %arg5[%c0_9, %c0_10] : memref<1x40xf32, #tpu.memory_space<vmem>>, vector<1x40xf32>
    %11 = arith.addf %9, %10 : vector<1x40xf32>
    %12 = vector.extract_strided_slice %11 {offsets = [0, 0], sizes = [1, 8], strides = [1, 1]} : vector<1x40xf32> to vector<1x8xf32>
    %cst_11 = arith.constant 0.000000e+00 : f32
    %cst_12 = arith.constant 6.000000e+00 : f32
    %13 = vector.broadcast %cst_11 : f32 to vector<1x8xf32>
    %14 = arith.maximumf %13, %12 : vector<1x8xf32>
    %15 = vector.broadcast %cst_12 : f32 to vector<1x8xf32>
    %16 = arith.minimumf %15, %14 : vector<1x8xf32>
    %cst_13 = arith.constant 5.000000e+01 : f32
    %17 = vector.broadcast %cst_13 : f32 to vector<1x8xf32>
    %18 = arith.mulf %16, %17 : vector<1x8xf32>
    %cst_14 = arith.constant 6.000000e+00 : f32
    %19 = vector.broadcast %cst_14 : f32 to vector<1x8xf32>
    %20 = arith.divf %18, %19 : vector<1x8xf32>
    %21 = math.roundeven %20 : vector<1x8xf32>
    %22 = vector.extract_strided_slice %11 {offsets = [0, 8], sizes = [1, 8], strides = [1, 1]} : vector<1x40xf32> to vector<1x8xf32>
    %cst_15 = arith.constant 0.000000e+00 : f32
    %23 = vector.broadcast %cst_15 : f32 to vector<1x8xf32>
    %24 = vector.extract_strided_slice %11 {offsets = [0, 16], sizes = [1, 8], strides = [1, 1]} : vector<1x40xf32> to vector<1x8xf32>
    %25 = arith.cmpf ogt, %24, %22 : vector<1x8xf32>
    %cst_16 = arith.constant 1.000000e+00 : f32
    %26 = vector.broadcast %cst_16 : f32 to vector<1x8xf32>
    %27 = arith.select %25, %26, %23 : vector<1x8xi1>, vector<1x8xf32>
    %28 = arith.select %25, %24, %22 : vector<1x8xi1>, vector<1x8xf32>
    %29 = vector.extract_strided_slice %11 {offsets = [0, 24], sizes = [1, 8], strides = [1, 1]} : vector<1x40xf32> to vector<1x8xf32>
    %30 = arith.cmpf ogt, %29, %28 : vector<1x8xf32>
    %cst_17 = arith.constant 2.000000e+00 : f32
    %31 = vector.broadcast %cst_17 : f32 to vector<1x8xf32>
    %32 = arith.select %30, %31, %27 : vector<1x8xi1>, vector<1x8xf32>
    %33 = arith.select %30, %29, %28 : vector<1x8xi1>, vector<1x8xf32>
    %34 = vector.extract_strided_slice %11 {offsets = [0, 32], sizes = [1, 8], strides = [1, 1]} : vector<1x40xf32> to vector<1x8xf32>
    %35 = arith.cmpf ogt, %34, %33 : vector<1x8xf32>
    %cst_18 = arith.constant 3.000000e+00 : f32
    %36 = vector.broadcast %cst_18 : f32 to vector<1x8xf32>
    %37 = arith.select %35, %36, %32 : vector<1x8xi1>, vector<1x8xf32>
    %38 = tpu.concatenate %21, %37 in 1 : vector<1x8xf32>, vector<1x8xf32> -> vector<1x16xf32>
    %c0_19 = arith.constant 0 : index
    %c0_20 = arith.constant 0 : index
    %39 = vector.load %arg6[%c0_19, %c0_20] : memref<1x16xf32, #tpu.memory_space<vmem>>, vector<1x16xf32>
    tpu.vector_store %arg6[%c0_19, %c0_20], %38 {strides = array<i32>} : memref<1x16xf32, #tpu.memory_space<vmem>>, vector<1x16xf32>,
    return
  }
  func.func @transform_0(%arg0: i32) -> (i32, i32) {
    %c0_i32 = arith.constant 0 : i32
    %c0_i32_0 = arith.constant 0 : i32
    return %arg0, %c0_i32 : i32, i32
  }
  func.func @transform_1(%arg0: i32) -> (i32, i32) {
    %c0_i32 = arith.constant 0 : i32
    %c0_i32_0 = arith.constant 0 : i32
    %c0_i32_1 = arith.constant 0 : i32
    return %c0_i32, %c0_i32_0 : i32, i32
  }
  func.func @transform_2(%arg0: i32) -> (i32, i32) {
    %c0_i32 = arith.constant 0 : i32
    %c0_i32_0 = arith.constant 0 : i32
    %c0_i32_1 = arith.constant 0 : i32
    return %c0_i32, %c0_i32_0 : i32, i32
  }
  func.func @transform_3(%arg0: i32) -> (i32, i32) {
    %c0_i32 = arith.constant 0 : i32
    %c0_i32_0 = arith.constant 0 : i32
    %c0_i32_1 = arith.constant 0 : i32
    return %c0_i32, %c0_i32_0 : i32, i32
  }
  func.func @transform_4(%arg0: i32) -> (i32, i32) {
    %c0_i32 = arith.constant 0 : i32
    %c0_i32_0 = arith.constant 0 : i32
    %c0_i32_1 = arith.constant 0 : i32
    return %c0_i32, %c0_i32_0 : i32, i32
  }
  func.func @transform_5(%arg0: i32) -> (i32, i32) {
    %c0_i32 = arith.constant 0 : i32
    %c0_i32_0 = arith.constant 0 : i32
    return %arg0, %c0_i32 : i32, i32
  }
}

</mosaic_0001>

<llo_original>
// kernel: tpu_custom_call.1
$region0: #{tpu_custom_call.1}
  #allocation0 [shape = 'u32[]', space=smem, size = 0x4, offset = 0x4, fixed_abs, tag = 'smem constant byte address 0x4 - core index']
  #allocation1 [shape = 'u32[144,128]{1,0:T(1,128)}', space=vmem, size = 0x12000, scoped, tag = 'internal scratch']
  %s0 = inlined_call_operand.vmem [shape: f32[1,128], index: 0, kind: input, shape index: {}]
  %s1 = inlined_call_operand.vmem [shape: f32[128,128], index: 1, kind: input, shape index: {}]
  %s2 = inlined_call_operand.vmem [shape: f32[1,128], index: 2, kind: input, shape index: {}]
  %s3 = inlined_call_operand.vmem [shape: f32[128,40], index: 3, kind: input, shape index: {}]
  %s4 = inlined_call_operand.vmem [shape: f32[1,40], index: 4, kind: input, shape index: {}]
  %s5 = inlined_call_operand.hbm [shape: f32[1,16], index: 5, kind: output, shape index: {}]
  %s6 = sld [smem:[#allocation0]]
  $region30: #{tpu_custom_call.1} parent=0
    _
  %s8 = ssub.s32 1, %s6
  %s9 = scalar_select 0, %s8, %s6
  $region1: #{tpu_custom_call.1} parent=0
    #allocation2 [shape = 'u8[512]{0}', space=vmem, size = 0x400, scoped, tag = 'output window, operand 0, single buffered']
    #allocation3 [shape = 's32[1]{0}', space=sflag, size = 0x4, scoped, tag = 'scoped memory for tpu_custom_call.1']
    %10 = vsyncpa [#allocation3], 0
    // Predicated region
    $region2: #{tpu_custom_call.1} parent=1 // pred_check
      _
    $region3: #{tpu_custom_call.1} parent=1 // pred_check_branch
      %12 = sbr.rel (0) target = $region5
    $region4: #{tpu_custom_call.1} parent=1 // pred_region
      _
    $region5: #{tpu_custom_call.1} parent=1 // pred_fallthru
      _
    // Predicated region
    $region6: #{tpu_custom_call.1} parent=1 // pred_check
      _
    $region7: #{tpu_custom_call.1} parent=1 // pred_check_branch
      %14 = sbr.rel (0) target = $region9
    $region8: #{tpu_custom_call.1} parent=1 // pred_region
      _
    $region9: #{tpu_custom_call.1} parent=1 // pred_fallthru
      _
    // Predicated region
    $region10: #{tpu_custom_call.1} parent=1 // pred_check
      _
    $region11: #{tpu_custom_call.1} parent=1 // pred_check_branch
      %16 = sbr.rel (0) target = $region13
    $region12: #{tpu_custom_call.1} parent=1 // pred_region
      _
    $region13: #{tpu_custom_call.1} parent=1 // pred_fallthru
      _
    // Predicated region
    $region14: #{tpu_custom_call.1} parent=1 // pred_check
      _
    $region15: #{tpu_custom_call.1} parent=1 // pred_check_branch
      %18 = sbr.rel (0) target = $region17
    $region16: #{tpu_custom_call.1} parent=1 // pred_region
      _
    $region17: #{tpu_custom_call.1} parent=1 // pred_fallthru
      _
    // Predicated region
    $region18: #{tpu_custom_call.1} parent=1 // pred_check
      _
    $region19: #{tpu_custom_call.1} parent=1 // pred_check_branch
      %20 = sbr.rel (0) target = $region21
    $region20: #{tpu_custom_call.1} parent=1 // pred_region
      _
    $region21: #{tpu_custom_call.1} parent=1 // pred_fallthru
      _
    %v21 = vld [vmem:[%s0] sm:$0x1]
    %v22 = vld [vmem:[%s1] sm:$0xff]
    %v23 = vld [vmem:[%s1 + $0x8] sm:$0xff]
    %v24 = vld [vmem:[%s1 + $0x10] sm:$0xff]
    %v25 = vld [vmem:[%s1 + $0x18] sm:$0xff]
    %v26 = vld [vmem:[%s1 + $0x20] sm:$0xff]
    %v27 = vld [vmem:[%s1 + $0x28] sm:$0xff]
    %v28 = vld [vmem:[%s1 + $0x30] sm:$0xff]
    %v29 = vld [vmem:[%s1 + $0x38] sm:$0xff]
    %v30 = vld [vmem:[%s1 + $0x40] sm:$0xff]
    %v31 = vld [vmem:[%s1 + $0x48] sm:$0xff]
    %v32 = vld [vmem:[%s1 + $0x50] sm:$0xff]
    %v33 = vld [vmem:[%s1 + $0x58] sm:$0xff]
    %v34 = vld [vmem:[%s1 + $0x60] sm:$0xff]
    %v35 = vld [vmem:[%s1 + $0x68] sm:$0xff]
    %v36 = vld [vmem:[%s1 + $0x70] sm:$0xff]
    %v37 = vld [vmem:[%s1 + $0x78] sm:$0xff]
    %v38 = vld [vmem:[%s2] sm:$0x1]
    %39 = vmatprep.subr.mxu0 0.0
    %v40 = vand.u32 %v22, 4294901760
    %41 = vmatpush1.msra.mxu0 %v40
    %42 = vmatprep.subr.mxu0 0.0
    %v43 = vand.u32 %v23, 4294901760
    %44 = vmatpush1.msra.mxu0 %v43
    %45 = vmatprep.subr.mxu0 0.0
    %v46 = vand.u32 %v24, 4294901760
    %47 = vmatpush1.msra.mxu0 %v46
    %48 = vmatprep.subr.mxu0 0.0
    %v49 = vand.u32 %v25, 4294901760
    %50 = vmatpush1.msra.mxu0 %v49
    %51 = vmatprep.subr.mxu0 0.0
    %v52 = vand.u32 %v26, 4294901760
    %53 = vmatpush1.msra.mxu0 %v52
    %54 = vmatprep.subr.mxu0 0.0
    %v55 = vand.u32 %v27, 4294901760
    %56 = vmatpush1.msra.mxu0 %v55
    %57 = vmatprep.subr.mxu0 0.0
    %v58 = vand.u32 %v28, 4294901760
    %59 = vmatpush1.msra.mxu0 %v58
    %60 = vmatprep.subr.mxu0 0.0
    %v61 = vand.u32 %v29, 4294901760
    %62 = vmatpush1.msra.mxu0 %v61
    %63 = vmatprep.subr.mxu0 0.0
    %v64 = vand.u32 %v30, 4294901760
    %65 = vmatpush1.msra.mxu0 %v64
    %66 = vmatprep.subr.mxu0 0.0
    %v67 = vand.u32 %v31, 4294901760
    %68 = vmatpush1.msra.mxu0 %v67
    %69 = vmatprep.subr.mxu0 0.0
    %v70 = vand.u32 %v32, 4294901760
    %71 = vmatpush1.msra.mxu0 %v70
    %72 = vmatprep.subr.mxu0 0.0
    %v73 = vand.u32 %v33, 4294901760
    %74 = vmatpush1.msra.mxu0 %v73
    %75 = vmatprep.subr.mxu0 0.0
    %v76 = vand.u32 %v34, 4294901760
    %77 = vmatpush1.msra.mxu0 %v76
    %78 = vmatprep.subr.mxu0 0.0
    %v79 = vand.u32 %v35, 4294901760
    %80 = vmatpush1.msra.mxu0 %v79
    %81 = vmatprep.subr.mxu0 0.0
    %v82 = vand.u32 %v36, 4294901760
    %83 = vmatpush1.msra.mxu0 %v82
    %84 = vmatprep.subr.mxu0 0.0
    %v85 = vand.u32 %v37, 4294901760
    %86 = vmatpush1.msra.mxu0 %v85
    %87 = vmatprep.subr.mxu0 0.0
    %88 = vmatpush1.msra.mxu0 0.0
    %89 = vmatprep.subr.mxu0 0.0
    %90 = vmatpush1.msra.mxu0 0.0
    %91 = vmatprep.subr.mxu0 0.0
    %92 = vmatpush1.msra.mxu0 0.0
    %93 = vmatprep.subr.mxu0 0.0
    %94 = vmatpush1.msra.mxu0 0.0
    %95 = vmatprep.subr.mxu0 0.0
    %96 = vmatpush1.msra.mxu0 0.0
    %97 = vmatprep.subr.mxu0 0.0
    %98 = vmatpush1.msra.mxu0 0.0
    %99 = vmatprep.subr.mxu0 0.0
    %100 = vmatpush1.msra.mxu0 0.0
    %101 = vmatprep.subr.mxu0 0.0
    %102 = vmatpush1.msra.mxu0 0.0
    %103 = vmatprep.subr.mxu0 0.0
    %104 = vmatpush1.msra.mxu0 0.0
    %105 = vmatprep.subr.mxu0 0.0
    %106 = vmatpush1.msra.mxu0 0.0
    %107 = vmatprep.subr.mxu0 0.0
    %108 = vmatpush1.msra.mxu0 0.0
    %109 = vmatprep.subr.mxu0 0.0
    %110 = vmatpush1.msra.mxu0 0.0
    %111 = vmatprep.subr.mxu0 0.0
    %112 = vmatpush1.msra.mxu0 0.0
    %113 = vmatprep.subr.mxu0 0.0
    %114 = vmatpush1.msra.mxu0 0.0
    %115 = vmatprep.subr.mxu0 0.0
    %116 = vmatpush1.msra.mxu0 0.0
    %117 = vmatprep.subr.mxu0 0.0
    %118 = vmatpush1.msra.mxu0 0.0
    %119 = vmatprep.mubr.f32.mxu0 0.0
    %v120 = vand.u32 %v21, 4294901760
    %v121 = vsub.f32 %v21, %v120
    %v122 = vand.u32 %v121, 4294901760
    %v123 = vsub.f32 %v121, %v122
    %v124 = vand.u32 %v123, 4294901760
    %125 = vmatmul.mubr.f32.gmra.mrb[0].mxu0 %v124
    %v126 = vpop.f32.mrb[0].mxu0
    %v127 = vadd.f32 %v38, %v126
    %v128 = vpop.f32.mrb[0].mxu0
    %129 = vdwg.mxu0
    %130 = vmatprep.subr.mxu0 0.0
    %v131 = vand.u32 %v22, 4294901760
    %v132 = vsub.f32 %v22, %v131
    %v133 = vand.u32 %v132, 4294901760
    %v134 = vsub.f32 %v132, %v133
    %v135 = vand.u32 %v134, 4294901760
    %136 = vmatpush1.msra.mxu0 %v135
    %137 = vmatprep.subr.mxu0 0.0
    %v138 = vand.u32 %v23, 4294901760
    %v139 = vsub.f32 %v23, %v138
    %v140 = vand.u32 %v139, 4294901760
    %v141 = vsub.f32 %v139, %v140
    %v142 = vand.u32 %v141, 4294901760
    %143 = vmatpush1.msra.mxu0 %v142
    %144 = vmatprep.subr.mxu0 0.0
    %v145 = vand.u32 %v24, 4294901760
    %v146 = vsub.f32 %v24, %v145
    %v147 = vand.u32 %v146, 4294901760
    %v148 = vsub.f32 %v146, %v147
    %v149 = vand.u32 %v148, 4294901760
    %150 = vmatpush1.msra.mxu0 %v149
    %151 = vmatprep.subr.mxu0 0.0
    %v152 = vand.u32 %v25, 4294901760
    %v153 = vsub.f32 %v25, %v152
    %v154 = vand.u32 %v153, 4294901760
    %v155 = vsub.f32 %v153, %v154
    %v156 = vand.u32 %v155, 4294901760
    %157 = vmatpush1.msra.mxu0 %v156
    %158 = vmatprep.subr.mxu0 0.0
    %v159 = vand.u32 %v26, 4294901760
    %v160 = vsub.f32 %v26, %v159
    %v161 = vand.u32 %v160, 4294901760
    %v162 = vsub.f32 %v160, %v161
    %v163 = vand.u32 %v162, 4294901760
    %164 = vmatpush1.msra.mxu0 %v163
    %165 = vmatprep.subr.mxu0 0.0
    %v166 = vand.u32 %v27, 4294901760
    %v167 = vsub.f32 %v27, %v166
    %v168 = vand.u32 %v167, 4294901760
    %v169 = vsub.f32 %v167, %v168
    %v170 = vand.u32 %v169, 4294901760
    %171 = vmatpush1.msra.mxu0 %v170
    %172 = vmatprep.subr.mxu0 0.0
    %v173 = vand.u32 %v28, 4294901760
    %v174 = vsub.f32 %v28, %v173
    %v175 = vand.u32 %v174, 4294901760
    %v176 = vsub.f32 %v174, %v175
    %v177 = vand.u32 %v176, 4294901760
    %178 = vmatpush1.msra.mxu0 %v177
    %179 = vmatprep.subr.mxu0 0.0
    %v180 = vand.u32 %v29, 4294901760
    %v181 = vsub.f32 %v29, %v180
    %v182 = vand.u32 %v181, 4294901760
    %v183 = vsub.f32 %v181, %v182
    %v184 = vand.u32 %v183, 4294901760
    %185 = vmatpush1.msra.mxu0 %v184
    %186 = vmatprep.subr.mxu0 0.0
    %v187 = vand.u32 %v30, 4294901760
    %v188 = vsub.f32 %v30, %v187
    %v189 = vand.u32 %v188, 4294901760
    %v190 = vsub.f32 %v188, %v189
    %v191 = vand.u32 %v190, 4294901760
    %192 = vmatpush1.msra.mxu0 %v191
    %193 = vmatprep.subr.mxu0 0.0
    %v194 = vand.u32 %v31, 4294901760
    %v195 = vsub.f32 %v31, %v194
    %v196 = vand.u32 %v195, 4294901760
    %v197 = vsub.f32 %v195, %v196
    %v198 = vand.u32 %v197, 4294901760
    %199 = vmatpush1.msra.mxu0 %v198
    %200 = vmatprep.subr.mxu0 0.0
    %v201 = vand.u32 %v32, 4294901760
    %v202 = vsub.f32 %v32, %v201
    %v203 = vand.u32 %v202, 4294901760
    %v204 = vsub.f32 %v202, %v203
    %v205 = vand.u32 %v204, 4294901760
    %206 = vmatpush1.msra.mxu0 %v205
    %207 = vmatprep.subr.mxu0 0.0
    %v208 = vand.u32 %v33, 4294901760
    %v209 = vsub.f32 %v33, %v208
    %v210 = vand.u32 %v209, 4294901760
    %v211 = vsub.f32 %v209, %v210
    %v212 = vand.u32 %v211, 4294901760
    %213 = vmatpush1.msra.mxu0 %v212
    %214 = vmatprep.subr.mxu0 0.0
    %v215 = vand.u32 %v34, 4294901760
    %v216 = vsub.f32 %v34, %v215
    %v217 = vand.u32 %v216, 4294901760
    %v218 = vsub.f32 %v216, %v217
    %v219 = vand.u32 %v218, 4294901760
    %220 = vmatpush1.msra.mxu0 %v219
    %221 = vmatprep.subr.mxu0 0.0
    %v222 = vand.u32 %v35, 4294901760
    %v223 = vsub.f32 %v35, %v222
    %v224 = vand.u32 %v223, 4294901760
    %v225 = vsub.f32 %v223, %v224
    %v226 = vand.u32 %v225, 4294901760
    %227 = vmatpush1.msra.mxu0 %v226
    %228 = vmatprep.subr.mxu0 0.0
    %v229 = vand.u32 %v36, 4294901760
    %v230 = vsub.f32 %v36, %v229
    %v231 = vand.u32 %v230, 4294901760
    %v232 = vsub.f32 %v230, %v231
    %v233 = vand.u32 %v232, 4294901760
    %234 = vmatpush1.msra.mxu0 %v233
    %235 = vmatprep.subr.mxu0 0.0
    %v236 = vand.u32 %v37, 4294901760
    %v237 = vsub.f32 %v37, %v236
    %v238 = vand.u32 %v237, 4294901760
    %v239 = vsub.f32 %v237, %v238
    %v240 = vand.u32 %v239, 4294901760
    %241 = vmatpush1.msra.mxu0 %v240
    %242 = vmatprep.subr.mxu0 0.0
    %243 = vmatpush1.msra.mxu0 0.0
    %244 = vmatprep.subr.mxu0 0.0
    %245 = vmatpush1.msra.mxu0 0.0
    %246 = vmatprep.subr.mxu0 0.0
    %247 = vmatpush1.msra.mxu0 0.0
    %248 = vmatprep.subr.mxu0 0.0
    %249 = vmatpush1.msra.mxu0 0.0
    %250 = vmatprep.subr.mxu0 0.0
    %251 = vmatpush1.msra.mxu0 0.0
    %252 = vmatprep.subr.mxu0 0.0
    %253 = vmatpush1.msra.mxu0 0.0
    %254 = vmatprep.subr.mxu0 0.0
    %255 = vmatpush1.msra.mxu0 0.0
    %256 = vmatprep.subr.mxu0 0.0
    %257 = vmatpush1.msra.mxu0 0.0
    %258 = vmatprep.subr.mxu0 0.0
    %259 = vmatpush1.msra.mxu0 0.0
    %260 = vmatprep.subr.mxu0 0.0
    %261 = vmatpush1.msra.mxu0 0.0
    %262 = vmatprep.subr.mxu0 0.0
    %263 = vmatpush1.msra.mxu0 0.0
    %264 = vmatprep.subr.mxu0 0.0
    %265 = vmatpush1.msra.mxu0 0.0
    %266 = vmatprep.subr.mxu0 0.0
    %267 = vmatpush1.msra.mxu0 0.0
    %268 = vmatprep.subr.mxu0 0.0
    %269 = vmatpush1.msra.mxu0 0.0
    %270 = vmatprep.subr.mxu0 0.0
    %271 = vmatpush1.msra.mxu0 0.0
    %272 = vmatprep.subr.mxu0 0.0
    %273 = vmatpush1.msra.mxu0 0.0
    %274 = vmatprep.mubr.f32.mxu0 0.0
    %v275 = vand.u32 %v21, 4294901760
    %276 = vmatmul.mubr.f32.gmra.mrb[0].mxu0 %v275
    %v277 = vpop.f32.mrb[0].mxu0
    %v278 = vadd.f32 %v127, %v277
    %v279 = vpop.f32.mrb[0].mxu0
    %280 = vdwg.mxu0
    %281 = vmatprep.subr.mxu0 0.0
    %v282 = vand.u32 %v22, 4294901760
    %v283 = vsub.f32 %v22, %v282
    %284 = vmatpush1.msra.mxu0 %v283
    %285 = vmatprep.subr.mxu0 0.0
    %v286 = vand.u32 %v23, 4294901760
    %v287 = vsub.f32 %v23, %v286
    %288 = vmatpush1.msra.mxu0 %v287
    %289 = vmatprep.subr.mxu0 0.0
    %v290 = vand.u32 %v24, 4294901760
    %v291 = vsub.f32 %v24, %v290
    %292 = vmatpush1.msra.mxu0 %v291
    %293 = vmatprep.subr.mxu0 0.0
    %v294 = vand.u32 %v25, 4294901760
    %v295 = vsub.f32 %v25, %v294
    %296 = vmatpush1.msra.mxu0 %v295
    %297 = vmatprep.subr.mxu0 0.0
    %v298 = vand.u32 %v26, 4294901760
    %v299 = vsub.f32 %v26, %v298
    %300 = vmatpush1.msra.mxu0 %v299
    %301 = vmatprep.subr.mxu0 0.0
    %v302 = vand.u32 %v27, 4294901760
    %v303 = vsub.f32 %v27, %v302
    %304 = vmatpush1.msra.mxu0 %v303
    %305 = vmatprep.subr.mxu0 0.0
    %v306 = vand.u32 %v28, 4294901760
    %v307 = vsub.f32 %v28, %v306
    %308 = vmatpush1.msra.mxu0 %v307
    %309 = vmatprep.subr.mxu0 0.0
    %v310 = vand.u32 %v29, 4294901760
    %v311 = vsub.f32 %v29, %v310
    %312 = vmatpush1.msra.mxu0 %v311
    %313 = vmatprep.subr.mxu0 0.0
    %v314 = vand.u32 %v30, 4294901760
    %v315 = vsub.f32 %v30, %v314
    %316 = vmatpush1.msra.mxu0 %v315
    %317 = vmatprep.subr.mxu0 0.0
    %v318 = vand.u32 %v31, 4294901760
    %v319 = vsub.f32 %v31, %v318
    %320 = vmatpush1.msra.mxu0 %v319
    %321 = vmatprep.subr.mxu0 0.0
    %v322 = vand.u32 %v32, 4294901760
    %v323 = vsub.f32 %v32, %v322
    %324 = vmatpush1.msra.mxu0 %v323
    %325 = vmatprep.subr.mxu0 0.0
    %v326 = vand.u32 %v33, 4294901760
    %v327 = vsub.f32 %v33, %v326
    %328 = vmatpush1.msra.mxu0 %v327
    %329 = vmatprep.subr.mxu0 0.0
    %v330 = vand.u32 %v34, 4294901760
    %v331 = vsub.f32 %v34, %v330
    %332 = vmatpush1.msra.mxu0 %v331
    %333 = vmatprep.subr.mxu0 0.0
    %v334 = vand.u32 %v35, 4294901760
    %v335 = vsub.f32 %v35, %v334
    %336 = vmatpush1.msra.mxu0 %v335
    %337 = vmatprep.subr.mxu0 0.0
    %v338 = vand.u32 %v36, 4294901760
    %v339 = vsub.f32 %v36, %v338
    %340 = vmatpush1.msra.mxu0 %v339
    %341 = vmatprep.subr.mxu0 0.0
    %v342 = vand.u32 %v37, 4294901760
    %v343 = vsub.f32 %v37, %v342
    %344 = vmatpush1.msra.mxu0 %v343
    %345 = vmatprep.subr.mxu0 0.0
    %346 = vmatpush1.msra.mxu0 0.0
    %347 = vmatprep.subr.mxu0 0.0
    %348 = vmatpush1.msra.mxu0 0.0
    %349 = vmatprep.subr.mxu0 0.0
    %350 = vmatpush1.msra.mxu0 0.0
    %351 = vmatprep.subr.mxu0 0.0
    %352 = vmatpush1.msra.mxu0 0.0
    %353 = vmatprep.subr.mxu0 0.0
    %354 = vmatpush1.msra.mxu0 0.0
    %355 = vmatprep.subr.mxu0 0.0
    %356 = vmatpush1.msra.mxu0 0.0
    %357 = vmatprep.subr.mxu0 0.0
    %358 = vmatpush1.msra.mxu0 0.0
    %359 = vmatprep.subr.mxu0 0.0
    %360 = vmatpush1.msra.mxu0 0.0
    %361 = vmatprep.subr.mxu0 0.0
    %362 = vmatpush1.msra.mxu0 0.0
    %363 = vmatprep.subr.mxu0 0.0
    %364 = vmatpush1.msra.mxu0 0.0
    %365 = vmatprep.subr.mxu0 0.0
    %366 = vmatpush1.msra.mxu0 0.0
    %367 = vmatprep.subr.mxu0 0.0
    %368 = vmatpush1.msra.mxu0 0.0
    %369 = vmatprep.subr.mxu0 0.0
    %370 = vmatpush1.msra.mxu0 0.0
    %371 = vmatprep.subr.mxu0 0.0
    %372 = vmatpush1.msra.mxu0 0.0
    %373 = vmatprep.subr.mxu0 0.0
    %374 = vmatpush1.msra.mxu0 0.0
    %375 = vmatprep.subr.mxu0 0.0
    %376 = vmatpush1.msra.mxu0 0.0
    %377 = vmatprep.mubr.f32.mxu0 0.0
    %v378 = vand.u32 %v21, 4294901760
    %v379 = vsub.f32 %v21, %v378
    %380 = vmatmul.mubr.f32.gmra.mrb[0].mxu0 %v379
    %v381 = vpop.f32.mrb[0].mxu0
    %v382 = vadd.f32 %v278, %v381
    %v383 = vpop.f32.mrb[0].mxu0
    %384 = vdwg.mxu0
    %385 = vmatprep.subr.mxu0 0.0
    %v386 = vand.u32 %v22, 4294901760
    %387 = vmatpush1.msra.mxu0 %v386
    %388 = vmatprep.subr.mxu0 0.0
    %v389 = vand.u32 %v23, 4294901760
    %390 = vmatpush1.msra.mxu0 %v389
    %391 = vmatprep.subr.mxu0 0.0
    %v392 = vand.u32 %v24, 4294901760
    %393 = vmatpush1.msra.mxu0 %v392
    %394 = vmatprep.subr.mxu0 0.0
    %v395 = vand.u32 %v25, 4294901760
    %396 = vmatpush1.msra.mxu0 %v395
    %397 = vmatprep.subr.mxu0 0.0
    %v398 = vand.u32 %v26, 4294901760
    %399 = vmatpush1.msra.mxu0 %v398
    %400 = vmatprep.subr.mxu0 0.0
    %v401 = vand.u32 %v27, 4294901760
    %402 = vmatpush1.msra.mxu0 %v401
    %403 = vmatprep.subr.mxu0 0.0
    %v404 = vand.u32 %v28, 4294901760
    %405 = vmatpush1.msra.mxu0 %v404
    %406 = vmatprep.subr.mxu0 0.0
    %v407 = vand.u32 %v29, 4294901760
    %408 = vmatpush1.msra.mxu0 %v407
    %409 = vmatprep.subr.mxu0 0.0
    %v410 = vand.u32 %v30, 4294901760
    %411 = vmatpush1.msra.mxu0 %v410
    %412 = vmatprep.subr.mxu0 0.0
    %v413 = vand.u32 %v31, 4294901760
    %414 = vmatpush1.msra.mxu0 %v413
    %415 = vmatprep.subr.mxu0 0.0
    %v416 = vand.u32 %v32, 4294901760
    %417 = vmatpush1.msra.mxu0 %v416
    %418 = vmatprep.subr.mxu0 0.0
    %v419 = vand.u32 %v33, 4294901760
    %420 = vmatpush1.msra.mxu0 %v419
    %421 = vmatprep.subr.mxu0 0.0
    %v422 = vand.u32 %v34, 4294901760
    %423 = vmatpush1.msra.mxu0 %v422
    %424 = vmatprep.subr.mxu0 0.0
    %v425 = vand.u32 %v35, 4294901760
    %426 = vmatpush1.msra.mxu0 %v425
    %427 = vmatprep.subr.mxu0 0.0
    %v428 = vand.u32 %v36, 4294901760
    %429 = vmatpush1.msra.mxu0 %v428
    %430 = vmatprep.subr.mxu0 0.0
    %v431 = vand.u32 %v37, 4294901760
    %432 = vmatpush1.msra.mxu0 %v431
    %433 = vmatprep.subr.mxu0 0.0
    %434 = vmatpush1.msra.mxu0 0.0
    %435 = vmatprep.subr.mxu0 0.0
    %436 = vmatpush1.msra.mxu0 0.0
    %437 = vmatprep.subr.mxu0 0.0
    %438 = vmatpush1.msra.mxu0 0.0
    %439 = vmatprep.subr.mxu0 0.0
    %440 = vmatpush1.msra.mxu0 0.0
    %441 = vmatprep.subr.mxu0 0.0
    %442 = vmatpush1.msra.mxu0 0.0
    %443 = vmatprep.subr.mxu0 0.0
    %444 = vmatpush1.msra.mxu0 0.0
    %445 = vmatprep.subr.mxu0 0.0
    %446 = vmatpush1.msra.mxu0 0.0
    %447 = vmatprep.subr.mxu0 0.0
    %448 = vmatpush1.msra.mxu0 0.0
    %449 = vmatprep.subr.mxu0 0.0
    %450 = vmatpush1.msra.mxu0 0.0
    %451 = vmatprep.subr.mxu0 0.0
    %452 = vmatpush1.msra.mxu0 0.0
    %453 = vmatprep.subr.mxu0 0.0
    %454 = vmatpush1.msra.mxu0 0.0
    %455 = vmatprep.subr.mxu0 0.0
    %456 = vmatpush1.msra.mxu0 0.0
    %457 = vmatprep.subr.mxu0 0.0
    %458 = vmatpush1.msra.mxu0 0.0
    %459 = vmatprep.subr.mxu0 0.0
    %460 = vmatpush1.msra.mxu0 0.0
    %461 = vmatprep.subr.mxu0 0.0
    %462 = vmatpush1.msra.mxu0 0.0
    %463 = vmatprep.subr.mxu0 0.0
    %464 = vmatpush1.msra.mxu0 0.0
    %465 = vmatprep.mubr.f32.mxu0 0.0
    %v466 = vand.u32 %v21, 4294901760
    %v467 = vsub.f32 %v21, %v466
    %v468 = vand.u32 %v467, 4294901760
    %469 = vmatmul.mubr.f32.gmra.mrb[0].mxu0 %v468
    %v470 = vpop.f32.mrb[0].mxu0
    %v471 = vadd.f32 %v382, %v470
    %v472 = vpop.f32.mrb[0].mxu0
    %473 = vdwg.mxu0
    %474 = vmatprep.subr.mxu0 0.0
    %v475 = vand.u32 %v22, 4294901760
    %v476 = vsub.f32 %v22, %v475
    %v477 = vand.u32 %v476, 4294901760
    %478 = vmatpush1.msra.mxu0 %v477
    %479 = vmatprep.subr.mxu0 0.0
    %v480 = vand.u32 %v23, 4294901760
    %v481 = vsub.f32 %v23, %v480
    %v482 = vand.u32 %v481, 4294901760
    %483 = vmatpush1.msra.mxu0 %v482
    %484 = vmatprep.subr.mxu0 0.0
    %v485 = vand.u32 %v24, 4294901760
    %v486 = vsub.f32 %v24, %v485
    %v487 = vand.u32 %v486, 4294901760
    %488 = vmatpush1.msra.mxu0 %v487
    %489 = vmatprep.subr.mxu0 0.0
    %v490 = vand.u32 %v25, 4294901760
    %v491 = vsub.f32 %v25, %v490
    %v492 = vand.u32 %v491, 4294901760
    %493 = vmatpush1.msra.mxu0 %v492
    %494 = vmatprep.subr.mxu0 0.0
    %v495 = vand.u32 %v26, 4294901760
    %v496 = vsub.f32 %v26, %v495
    %v497 = vand.u32 %v496, 4294901760
    %498 = vmatpush1.msra.mxu0 %v497
    %499 = vmatprep.subr.mxu0 0.0
    %v500 = vand.u32 %v27, 4294901760
    %v501 = vsub.f32 %v27, %v500
    %v502 = vand.u32 %v501, 4294901760
    %503 = vmatpush1.msra.mxu0 %v502
    %504 = vmatprep.subr.mxu0 0.0
    %v505 = vand.u32 %v28, 4294901760
    %v506 = vsub.f32 %v28, %v505
    %v507 = vand.u32 %v506, 4294901760
    %508 = vmatpush1.msra.mxu0 %v507
    %509 = vmatprep.subr.mxu0 0.0
    %v510 = vand.u32 %v29, 4294901760
    %v511 = vsub.f32 %v29, %v510
    %v512 = vand.u32 %v511, 4294901760
    %513 = vmatpush1.msra.mxu0 %v512
    %514 = vmatprep.subr.mxu0 0.0
    %v515 = vand.u32 %v30, 4294901760
    %v516 = vsub.f32 %v30, %v515
    %v517 = vand.u32 %v516, 4294901760
    %518 = vmatpush1.msra.mxu0 %v517
    %519 = vmatprep.subr.mxu0 0.0
    %v520 = vand.u32 %v31, 4294901760
    %v521 = vsub.f32 %v31, %v520
    %v522 = vand.u32 %v521, 4294901760
    %523 = vmatpush1.msra.mxu0 %v522
    %524 = vmatprep.subr.mxu0 0.0
    %v525 = vand.u32 %v32, 4294901760
    %v526 = vsub.f32 %v32, %v525
    %v527 = vand.u32 %v526, 4294901760
    %528 = vmatpush1.msra.mxu0 %v527
    %529 = vmatprep.subr.mxu0 0.0
    %v530 = vand.u32 %v33, 4294901760
    %v531 = vsub.f32 %v33, %v530
    %v532 = vand.u32 %v531, 4294901760
    %533 = vmatpush1.msra.mxu0 %v532
    %534 = vmatprep.subr.mxu0 0.0
    %v535 = vand.u32 %v34, 4294901760
    %v536 = vsub.f32 %v34, %v535
    %v537 = vand.u32 %v536, 4294901760
    %538 = vmatpush1.msra.mxu0 %v537
    %539 = vmatprep.subr.mxu0 0.0
    %v540 = vand.u32 %v35, 4294901760
    %v541 = vsub.f32 %v35, %v540
    %v542 = vand.u32 %v541, 4294901760
    %543 = vmatpush1.msra.mxu0 %v542
    %544 = vmatprep.subr.mxu0 0.0
    %v545 = vand.u32 %v36, 4294901760
    %v546 = vsub.f32 %v36, %v545
    %v547 = vand.u32 %v546, 4294901760
    %548 = vmatpush1.msra.mxu0 %v547
    %549 = vmatprep.subr.mxu0 0.0
    %v550 = vand.u32 %v37, 4294901760
    %v551 = vsub.f32 %v37, %v550
    %v552 = vand.u32 %v551, 4294901760
    %553 = vmatpush1.msra.mxu0 %v552
    %554 = vmatprep.subr.mxu0 0.0
    %555 = vmatpush1.msra.mxu0 0.0
    %556 = vmatprep.subr.mxu0 0.0
    %557 = vmatpush1.msra.mxu0 0.0
    %558 = vmatprep.subr.mxu0 0.0
    %559 = vmatpush1.msra.mxu0 0.0
    %560 = vmatprep.subr.mxu0 0.0
    %561 = vmatpush1.msra.mxu0 0.0
    %562 = vmatprep.subr.mxu0 0.0
    %563 = vmatpush1.msra.mxu0 0.0
    %564 = vmatprep.subr.mxu0 0.0
    %565 = vmatpush1.msra.mxu0 0.0
    %566 = vmatprep.subr.mxu0 0.0
    %567 = vmatpush1.msra.mxu0 0.0
    %568 = vmatprep.subr.mxu0 0.0
    %569 = vmatpush1.msra.mxu0 0.0
    %570 = vmatprep.subr.mxu0 0.0
    %571 = vmatpush1.msra.mxu0 0.0
    %572 = vmatprep.subr.mxu0 0.0
    %573 = vmatpush1.msra.mxu0 0.0
    %574 = vmatprep.subr.mxu0 0.0
    %575 = vmatpush1.msra.mxu0 0.0
    %576 = vmatprep.subr.mxu0 0.0
    %577 = vmatpush1.msra.mxu0 0.0
    %578 = vmatprep.subr.mxu0 0.0
    %579 = vmatpush1.msra.mxu0 0.0
    %580 = vmatprep.subr.mxu0 0.0
    %581 = vmatpush1.msra.mxu0 0.0
    %582 = vmatprep.subr.mxu0 0.0
    %583 = vmatpush1.msra.mxu0 0.0
    %584 = vmatprep.subr.mxu0 0.0
    %585 = vmatpush1.msra.mxu0 0.0
    %586 = vmatprep.mubr.f32.mxu0 0.0
    %v587 = vand.u32 %v21, 4294901760
    %588 = vmatmul.mubr.f32.gmra.mrb[0].mxu0 %v587
    %v589 = vpop.f32.mrb[0].mxu0
    %v590 = vadd.f32 %v471, %v589
    %v591 = vpop.f32.mrb[0].mxu0
    %592 = vdwg.mxu0
    %593 = vmatprep.subr.mxu0 0.0
    %v594 = vand.u32 %v22, 4294901760
    %595 = vmatpush1.msra.mxu0 %v594
    %596 = vmatprep.subr.mxu0 0.0
    %v597 = vand.u32 %v23, 4294901760
    %598 = vmatpush1.msra.mxu0 %v597
    %599 = vmatprep.subr.mxu0 0.0
    %v600 = vand.u32 %v24, 4294901760
    %601 = vmatpush1.msra.mxu0 %v600
    %602 = vmatprep.subr.mxu0 0.0
    %v603 = vand.u32 %v25, 4294901760
    %604 = vmatpush1.msra.mxu0 %v603
    %605 = vmatprep.subr.mxu0 0.0
    %v606 = vand.u32 %v26, 4294901760
    %607 = vmatpush1.msra.mxu0 %v606
    %608 = vmatprep.subr.mxu0 0.0
    %v609 = vand.u32 %v27, 4294901760
    %610 = vmatpush1.msra.mxu0 %v609
    %611 = vmatprep.subr.mxu0 0.0
    %v612 = vand.u32 %v28, 4294901760
    %613 = vmatpush1.msra.mxu0 %v612
    %614 = vmatprep.subr.mxu0 0.0
    %v615 = vand.u32 %v29, 4294901760
    %616 = vmatpush1.msra.mxu0 %v615
    %617 = vmatprep.subr.mxu0 0.0
    %v618 = vand.u32 %v30, 4294901760
    %619 = vmatpush1.msra.mxu0 %v618
    %620 = vmatprep.subr.mxu0 0.0
    %v621 = vand.u32 %v31, 4294901760
    %622 = vmatpush1.msra.mxu0 %v621
    %623 = vmatprep.subr.mxu0 0.0
    %v624 = vand.u32 %v32, 4294901760
    %625 = vmatpush1.msra.mxu0 %v624
    %626 = vmatprep.subr.mxu0 0.0
    %v627 = vand.u32 %v33, 4294901760
    %628 = vmatpush1.msra.mxu0 %v627
    %629 = vmatprep.subr.mxu0 0.0
    %v630 = vand.u32 %v34, 4294901760
    %631 = vmatpush1.msra.mxu0 %v630
    %632 = vmatprep.subr.mxu0 0.0
    %v633 = vand.u32 %v35, 4294901760
    %634 = vmatpush1.msra.mxu0 %v633
    %635 = vmatprep.subr.mxu0 0.0
    %v636 = vand.u32 %v36, 4294901760
    %637 = vmatpush1.msra.mxu0 %v636
    %638 = vmatprep.subr.mxu0 0.0
    %v639 = vand.u32 %v37, 4294901760
    %640 = vmatpush1.msra.mxu0 %v639
    %641 = vmatprep.subr.mxu0 0.0
    %642 = vmatpush1.msra.mxu0 0.0
    %643 = vmatprep.subr.mxu0 0.0
    %644 = vmatpush1.msra.mxu0 0.0
    %645 = vmatprep.subr.mxu0 0.0
    %646 = vmatpush1.msra.mxu0 0.0
    %647 = vmatprep.subr.mxu0 0.0
    %648 = vmatpush1.msra.mxu0 0.0
    %649 = vmatprep.subr.mxu0 0.0
    %650 = vmatpush1.msra.mxu0 0.0
    %651 = vmatprep.subr.mxu0 0.0
    %652 = vmatpush1.msra.mxu0 0.0
    %653 = vmatprep.subr.mxu0 0.0
    %654 = vmatpush1.msra.mxu0 0.0
    %655 = vmatprep.subr.mxu0 0.0
    %656 = vmatpush1.msra.mxu0 0.0
    %657 = vmatprep.subr.mxu0 0.0
    %658 = vmatpush1.msra.mxu0 0.0
    %659 = vmatprep.subr.mxu0 0.0
    %660 = vmatpush1.msra.mxu0 0.0
    %661 = vmatprep.subr.mxu0 0.0
    %662 = vmatpush1.msra.mxu0 0.0
    %663 = vmatprep.subr.mxu0 0.0
    %664 = vmatpush1.msra.mxu0 0.0
    %665 = vmatprep.subr.mxu0 0.0
    %666 = vmatpush1.msra.mxu0 0.0
    %667 = vmatprep.subr.mxu0 0.0
    %668 = vmatpush1.msra.mxu0 0.0
    %669 = vmatprep.subr.mxu0 0.0
    %670 = vmatpush1.msra.mxu0 0.0
    %671 = vmatprep.subr.mxu0 0.0
    %672 = vmatpush1.msra.mxu0 0.0
    %673 = vmatprep.mubr.f32.mxu0 0.0
    %v674 = vand.u32 %v21, 4294901760
    %675 = vmatmul.mubr.f32.gmra.mrb[0].mxu0 %v674
    %v676 = vpop.f32.mrb[0].mxu0
    %v677 = vadd.f32 %v590, %v676
    %v678 = vpop.f32.mrb[0].mxu0
    %679 = vdwg.mxu0
    %v680 = vmul.f32 %v677, 0.1
    %v681 = vmax.f32 %v677, %v680
    %v682 = vld [vmem:[%s3] sm:$0xff]
    %v683 = vld [vmem:[%s3 + $0x8] sm:$0xff]
    %v684 = vld [vmem:[%s3 + $0x10] sm:$0xff]
    %v685 = vld [vmem:[%s3 + $0x18] sm:$0xff]
    %v686 = vld [vmem:[%s3 + $0x20] sm:$0xff]
    %v687 = vld [vmem:[%s3 + $0x28] sm:$0xff]
    %v688 = vld [vmem:[%s3 + $0x30] sm:$0xff]
    %v689 = vld [vmem:[%s3 + $0x38] sm:$0xff]
    %v690 = vld [vmem:[%s3 + $0x40] sm:$0xff]
    %v691 = vld [vmem:[%s3 + $0x48] sm:$0xff]
    %v692 = vld [vmem:[%s3 + $0x50] sm:$0xff]
    %v693 = vld [vmem:[%s3 + $0x58] sm:$0xff]
    %v694 = vld [vmem:[%s3 + $0x60] sm:$0xff]
    %v695 = vld [vmem:[%s3 + $0x68] sm:$0xff]
    %v696 = vld [vmem:[%s3 + $0x70] sm:$0xff]
    %v697 = vld [vmem:[%s3 + $0x78] sm:$0xff]
    %v698 = vld [vmem:[%s4] sm:$0x1]
    %699 = vmatprep.subr.mxu0 0.0
    %v700 = vand.u32 %v682, 4294901760
    %701 = vmatpush1.msra.mxu0 %v700
    %702 = vmatprep.subr.mxu0 0.0
    %v703 = vand.u32 %v683, 4294901760
    %704 = vmatpush1.msra.mxu0 %v703
    %705 = vmatprep.subr.mxu0 0.0
    %v706 = vand.u32 %v684, 4294901760
    %707 = vmatpush1.msra.mxu0 %v706
    %708 = vmatprep.subr.mxu0 0.0
    %v709 = vand.u32 %v685, 4294901760
    %710 = vmatpush1.msra.mxu0 %v709
    %711 = vmatprep.subr.mxu0 0.0
    %v712 = vand.u32 %v686, 4294901760
    %713 = vmatpush1.msra.mxu0 %v712
    %714 = vmatprep.subr.mxu0 0.0
    %v715 = vand.u32 %v687, 4294901760
    %716 = vmatpush1.msra.mxu0 %v715
    %717 = vmatprep.subr.mxu0 0.0
    %v718 = vand.u32 %v688, 4294901760
    %719 = vmatpush1.msra.mxu0 %v718
    %720 = vmatprep.subr.mxu0 0.0
    %v721 = vand.u32 %v689, 4294901760
    %722 = vmatpush1.msra.mxu0 %v721
    %723 = vmatprep.subr.mxu0 0.0
    %v724 = vand.u32 %v690, 4294901760
    %725 = vmatpush1.msra.mxu0 %v724
    %726 = vmatprep.subr.mxu0 0.0
    %v727 = vand.u32 %v691, 4294901760
    %728 = vmatpush1.msra.mxu0 %v727
    %729 = vmatprep.subr.mxu0 0.0
    %v730 = vand.u32 %v692, 4294901760
    %731 = vmatpush1.msra.mxu0 %v730
    %732 = vmatprep.subr.mxu0 0.0
    %v733 = vand.u32 %v693, 4294901760
    %734 = vmatpush1.msra.mxu0 %v733
    %735 = vmatprep.subr.mxu0 0.0
    %v736 = vand.u32 %v694, 4294901760
    %737 = vmatpush1.msra.mxu0 %v736
    %738 = vmatprep.subr.mxu0 0.0
    %v739 = vand.u32 %v695, 4294901760
    %740 = vmatpush1.msra.mxu0 %v739
    %741 = vmatprep.subr.mxu0 0.0
    %v742 = vand.u32 %v696, 4294901760
    %743 = vmatpush1.msra.mxu0 %v742
    %744 = vmatprep.subr.mxu0 0.0
    %v745 = vand.u32 %v697, 4294901760
    %746 = vmatpush1.msra.mxu0 %v745
    %747 = vmatprep.subr.mxu0 0.0
    %748 = vmatpush1.msra.mxu0 0.0
    %749 = vmatprep.subr.mxu0 0.0
    %750 = vmatpush1.msra.mxu0 0.0
    %751 = vmatprep.subr.mxu0 0.0
    %752 = vmatpush1.msra.mxu0 0.0
    %753 = vmatprep.subr.mxu0 0.0
    %754 = vmatpush1.msra.mxu0 0.0
    %755 = vmatprep.subr.mxu0 0.0
    %756 = vmatpush1.msra.mxu0 0.0
    %757 = vmatprep.subr.mxu0 0.0
    %758 = vmatpush1.msra.mxu0 0.0
    %759 = vmatprep.subr.mxu0 0.0
    %760 = vmatpush1.msra.mxu0 0.0
    %761 = vmatprep.subr.mxu0 0.0
    %762 = vmatpush1.msra.mxu0 0.0
    %763 = vmatprep.subr.mxu0 0.0
    %764 = vmatpush1.msra.mxu0 0.0
    %765 = vmatprep.subr.mxu0 0.0
    %766 = vmatpush1.msra.mxu0 0.0
    %767 = vmatprep.subr.mxu0 0.0
    %768 = vmatpush1.msra.mxu0 0.0
    %769 = vmatprep.subr.mxu0 0.0
    %770 = vmatpush1.msra.mxu0 0.0
    %771 = vmatprep.subr.mxu0 0.0
    %772 = vmatpush1.msra.mxu0 0.0
    %773 = vmatprep.subr.mxu0 0.0
    %774 = vmatpush1.msra.mxu0 0.0
    %775 = vmatprep.subr.mxu0 0.0
    %776 = vmatpush1.msra.mxu0 0.0
    %777 = vmatprep.subr.mxu0 0.0
    %778 = vmatpush1.msra.mxu0 0.0
    %779 = vmatprep.mubr.f32.mxu0 0.0
    %v780 = vand.u32 %v681, 4294901760
    %v781 = vsub.f32 %v681, %v780
    %v782 = vand.u32 %v781, 4294901760
    %v783 = vsub.f32 %v781, %v782
    %v784 = vand.u32 %v783, 4294901760
    %785 = vmatmul.mubr.f32.gmra.mrb[0].mxu0 %v784
    %v786 = vpop.f32.mrb[0].mxu0
    %v787 = vadd.f32 %v698, %v786
    %v788 = vpop.f32.mrb[0].mxu0
    %789 = vdwg.mxu0
    %790 = vmatprep.subr.mxu0 0.0
    %v791 = vand.u32 %v682, 4294901760
    %v792 = vsub.f32 %v682, %v791
    %v793 = vand.u32 %v792, 4294901760
    %v794 = vsub.f32 %v792, %v793
    %v795 = vand.u32 %v794, 4294901760
    %796 = vmatpush1.msra.mxu0 %v795
    %797 = vmatprep.subr.mxu0 0.0
    %v798 = vand.u32 %v683, 4294901760
    %v799 = vsub.f32 %v683, %v798
    %v800 = vand.u32 %v799, 4294901760
    %v801 = vsub.f32 %v799, %v800
    %v802 = vand.u32 %v801, 4294901760
    %803 = vmatpush1.msra.mxu0 %v802
    %804 = vmatprep.subr.mxu0 0.0
    %v805 = vand.u32 %v684, 4294901760
    %v806 = vsub.f32 %v684, %v805
    %v807 = vand.u32 %v806, 4294901760
    %v808 = vsub.f32 %v806, %v807
    %v809 = vand.u32 %v808, 4294901760
    %810 = vmatpush1.msra.mxu0 %v809
    %811 = vmatprep.subr.mxu0 0.0
    %v812 = vand.u32 %v685, 4294901760
    %v813 = vsub.f32 %v685, %v812
    %v814 = vand.u32 %v813, 4294901760
    %v815 = vsub.f32 %v813, %v814
    %v816 = vand.u32 %v815, 4294901760
    %817 = vmatpush1.msra.mxu0 %v816
    %818 = vmatprep.subr.mxu0 0.0
    %v819 = vand.u32 %v686, 4294901760
    %v820 = vsub.f32 %v686, %v819
    %v821 = vand.u32 %v820, 4294901760
    %v822 = vsub.f32 %v820, %v821
    %v823 = vand.u32 %v822, 4294901760
    %824 = vmatpush1.msra.mxu0 %v823
    %825 = vmatprep.subr.mxu0 0.0
    %v826 = vand.u32 %v687, 4294901760
    %v827 = vsub.f32 %v687, %v826
    %v828 = vand.u32 %v827, 4294901760
    %v829 = vsub.f32 %v827, %v828
    %v830 = vand.u32 %v829, 4294901760
    %831 = vmatpush1.msra.mxu0 %v830
    %832 = vmatprep.subr.mxu0 0.0
    %v833 = vand.u32 %v688, 4294901760
    %v834 = vsub.f32 %v688, %v833
    %v835 = vand.u32 %v834, 4294901760
    %v836 = vsub.f32 %v834, %v835
    %v837 = vand.u32 %v836, 4294901760
    %838 = vmatpush1.msra.mxu0 %v837
    %839 = vmatprep.subr.mxu0 0.0
    %v840 = vand.u32 %v689, 4294901760
    %v841 = vsub.f32 %v689, %v840
    %v842 = vand.u32 %v841, 4294901760
    %v843 = vsub.f32 %v841, %v842
    %v844 = vand.u32 %v843, 4294901760
    %845 = vmatpush1.msra.mxu0 %v844
    %846 = vmatprep.subr.mxu0 0.0
    %v847 = vand.u32 %v690, 4294901760
    %v848 = vsub.f32 %v690, %v847
    %v849 = vand.u32 %v848, 4294901760
    %v850 = vsub.f32 %v848, %v849
    %v851 = vand.u32 %v850, 4294901760
    %852 = vmatpush1.msra.mxu0 %v851
    %853 = vmatprep.subr.mxu0 0.0
    %v854 = vand.u32 %v691, 4294901760
    %v855 = vsub.f32 %v691, %v854
    %v856 = vand.u32 %v855, 4294901760
    %v857 = vsub.f32 %v855, %v856
    %v858 = vand.u32 %v857, 4294901760
    %859 = vmatpush1.msra.mxu0 %v858
    %860 = vmatprep.subr.mxu0 0.0
    %v861 = vand.u32 %v692, 4294901760
    %v862 = vsub.f32 %v692, %v861
    %v863 = vand.u32 %v862, 4294901760
    %v864 = vsub.f32 %v862, %v863
    %v865 = vand.u32 %v864, 4294901760
    %866 = vmatpush1.msra.mxu0 %v865
    %867 = vmatprep.subr.mxu0 0.0
    %v868 = vand.u32 %v693, 4294901760
    %v869 = vsub.f32 %v693, %v868
    %v870 = vand.u32 %v869, 4294901760
    %v871 = vsub.f32 %v869, %v870
    %v872 = vand.u32 %v871, 4294901760
    %873 = vmatpush1.msra.mxu0 %v872
    %874 = vmatprep.subr.mxu0 0.0
    %v875 = vand.u32 %v694, 4294901760
    %v876 = vsub.f32 %v694, %v875
    %v877 = vand.u32 %v876, 4294901760
    %v878 = vsub.f32 %v876, %v877
    %v879 = vand.u32 %v878, 4294901760
    %880 = vmatpush1.msra.mxu0 %v879
    %881 = vmatprep.subr.mxu0 0.0
    %v882 = vand.u32 %v695, 4294901760
    %v883 = vsub.f32 %v695, %v882
    %v884 = vand.u32 %v883, 4294901760
    %v885 = vsub.f32 %v883, %v884
    %v886 = vand.u32 %v885, 4294901760
    %887 = vmatpush1.msra.mxu0 %v886
    %888 = vmatprep.subr.mxu0 0.0
    %v889 = vand.u32 %v696, 4294901760
    %v890 = vsub.f32 %v696, %v889
    %v891 = vand.u32 %v890, 4294901760
    %v892 = vsub.f32 %v890, %v891
    %v893 = vand.u32 %v892, 4294901760
    %894 = vmatpush1.msra.mxu0 %v893
    %895 = vmatprep.subr.mxu0 0.0
    %v896 = vand.u32 %v697, 4294901760
    %v897 = vsub.f32 %v697, %v896
    %v898 = vand.u32 %v897, 4294901760
    %v899 = vsub.f32 %v897, %v898
    %v900 = vand.u32 %v899, 4294901760
    %901 = vmatpush1.msra.mxu0 %v900
    %902 = vmatprep.subr.mxu0 0.0
    %903 = vmatpush1.msra.mxu0 0.0
    %904 = vmatprep.subr.mxu0 0.0
    %905 = vmatpush1.msra.mxu0 0.0
    %906 = vmatprep.subr.mxu0 0.0
    %907 = vmatpush1.msra.mxu0 0.0
    %908 = vmatprep.subr.mxu0 0.0
    %909 = vmatpush1.msra.mxu0 0.0
    %910 = vmatprep.subr.mxu0 0.0
    %911 = vmatpush1.msra.mxu0 0.0
    %912 = vmatprep.subr.mxu0 0.0
    %913 = vmatpush1.msra.mxu0 0.0
    %914 = vmatprep.subr.mxu0 0.0
    %915 = vmatpush1.msra.mxu0 0.0
    %916 = vmatprep.subr.mxu0 0.0
    %917 = vmatpush1.msra.mxu0 0.0
    %918 = vmatprep.subr.mxu0 0.0
    %919 = vmatpush1.msra.mxu0 0.0
    %920 = vmatprep.subr.mxu0 0.0
    %921 = vmatpush1.msra.mxu0 0.0
    %922 = vmatprep.subr.mxu0 0.0
    %923 = vmatpush1.msra.mxu0 0.0
    %924 = vmatprep.subr.mxu0 0.0
    %925 = vmatpush1.msra.mxu0 0.0
    %926 = vmatprep.subr.mxu0 0.0
    %927 = vmatpush1.msra.mxu0 0.0
    %928 = vmatprep.subr.mxu0 0.0
    %929 = vmatpush1.msra.mxu0 0.0
    %930 = vmatprep.subr.mxu0 0.0
    %931 = vmatpush1.msra.mxu0 0.0
    %932 = vmatprep.subr.mxu0 0.0
    %933 = vmatpush1.msra.mxu0 0.0
    %934 = vmatprep.mubr.f32.mxu0 0.0
    %v935 = vand.u32 %v681, 4294901760
    %936 = vmatmul.mubr.f32.gmra.mrb[0].mxu0 %v935
    %v937 = vpop.f32.mrb[0].mxu0
    %v938 = vadd.f32 %v787, %v937
    %v939 = vpop.f32.mrb[0].mxu0
    %940 = vdwg.mxu0
    %941 = vmatprep.subr.mxu0 0.0
    %v942 = vand.u32 %v682, 4294901760
    %v943 = vsub.f32 %v682, %v942
    %944 = vmatpush1.msra.mxu0 %v943
    %945 = vmatprep.subr.mxu0 0.0
    %v946 = vand.u32 %v683, 4294901760
    %v947 = vsub.f32 %v683, %v946
    %948 = vmatpush1.msra.mxu0 %v947
    %949 = vmatprep.subr.mxu0 0.0
    %v950 = vand.u32 %v684, 4294901760
    %v951 = vsub.f32 %v684, %v950
    %952 = vmatpush1.msra.mxu0 %v951
    %953 = vmatprep.subr.mxu0 0.0
    %v954 = vand.u32 %v685, 4294901760
    %v955 = vsub.f32 %v685, %v954
    %956 = vmatpush1.msra.mxu0 %v955
    %957 = vmatprep.subr.mxu0 0.0
    %v958 = vand.u32 %v686, 4294901760
    %v959 = vsub.f32 %v686, %v958
    %960 = vmatpush1.msra.mxu0 %v959
    %961 = vmatprep.subr.mxu0 0.0
    %v962 = vand.u32 %v687, 4294901760
    %v963 = vsub.f32 %v687, %v962
    %964 = vmatpush1.msra.mxu0 %v963
    %965 = vmatprep.subr.mxu0 0.0
    %v966 = vand.u32 %v688, 4294901760
    %v967 = vsub.f32 %v688, %v966
    %968 = vmatpush1.msra.mxu0 %v967
    %969 = vmatprep.subr.mxu0 0.0
    %v970 = vand.u32 %v689, 4294901760
    %v971 = vsub.f32 %v689, %v970
    %972 = vmatpush1.msra.mxu0 %v971
    %973 = vmatprep.subr.mxu0 0.0
    %v974 = vand.u32 %v690, 4294901760
    %v975 = vsub.f32 %v690, %v974
    %976 = vmatpush1.msra.mxu0 %v975
    %977 = vmatprep.subr.mxu0 0.0
    %v978 = vand.u32 %v691, 4294901760
    %v979 = vsub.f32 %v691, %v978
    %980 = vmatpush1.msra.mxu0 %v979
    %981 = vmatprep.subr.mxu0 0.0
    %v982 = vand.u32 %v692, 4294901760
    %v983 = vsub.f32 %v692, %v982
    %984 = vmatpush1.msra.mxu0 %v983
    %985 = vmatprep.subr.mxu0 0.0
    %v986 = vand.u32 %v693, 4294901760
    %v987 = vsub.f32 %v693, %v986
    %988 = vmatpush1.msra.mxu0 %v987
    %989 = vmatprep.subr.mxu0 0.0
    %v990 = vand.u32 %v694, 4294901760
    %v991 = vsub.f32 %v694, %v990
    %992 = vmatpush1.msra.mxu0 %v991
    %993 = vmatprep.subr.mxu0 0.0
    %v994 = vand.u32 %v695, 4294901760
    %v995 = vsub.f32 %v695, %v994
    %996 = vmatpush1.msra.mxu0 %v995
    %997 = vmatprep.subr.mxu0 0.0
    %v998 = vand.u32 %v696, 4294901760
    %v999 = vsub.f32 %v696, %v998
    %1000 = vmatpush1.msra.mxu0 %v999
    %1001 = vmatprep.subr.mxu0 0.0
    %v1002 = vand.u32 %v697, 4294901760
    %v1003 = vsub.f32 %v697, %v1002
    %1004 = vmatpush1.msra.mxu0 %v1003
    %1005 = vmatprep.subr.mxu0 0.0
    %1006 = vmatpush1.msra.mxu0 0.0
    %1007 = vmatprep.subr.mxu0 0.0
    %1008 = vmatpush1.msra.mxu0 0.0
    %1009 = vmatprep.subr.mxu0 0.0
    %1010 = vmatpush1.msra.mxu0 0.0
    %1011 = vmatprep.subr.mxu0 0.0
    %1012 = vmatpush1.msra.mxu0 0.0
    %1013 = vmatprep.subr.mxu0 0.0
    %1014 = vmatpush1.msra.mxu0 0.0
    %1015 = vmatprep.subr.mxu0 0.0
    %1016 = vmatpush1.msra.mxu0 0.0
    %1017 = vmatprep.subr.mxu0 0.0
    %1018 = vmatpush1.msra.mxu0 0.0
    %1019 = vmatprep.subr.mxu0 0.0
    %1020 = vmatpush1.msra.mxu0 0.0
    %1021 = vmatprep.subr.mxu0 0.0
    %1022 = vmatpush1.msra.mxu0 0.0
    %1023 = vmatprep.subr.mxu0 0.0
    %1024 = vmatpush1.msra.mxu0 0.0
    %1025 = vmatprep.subr.mxu0 0.0
    %1026 = vmatpush1.msra.mxu0 0.0
    %1027 = vmatprep.subr.mxu0 0.0
    %1028 = vmatpush1.msra.mxu0 0.0
    %1029 = vmatprep.subr.mxu0 0.0
    %1030 = vmatpush1.msra.mxu0 0.0
    %1031 = vmatprep.subr.mxu0 0.0
    %1032 = vmatpush1.msra.mxu0 0.0
    %1033 = vmatprep.subr.mxu0 0.0
    %1034 = vmatpush1.msra.mxu0 0.0
    %1035 = vmatprep.subr.mxu0 0.0
    %1036 = vmatpush1.msra.mxu0 0.0
    %1037 = vmatprep.mubr.f32.mxu0 0.0
    %v1038 = vand.u32 %v681, 4294901760
    %v1039 = vsub.f32 %v681, %v1038
    %1040 = vmatmul.mubr.f32.gmra.mrb[0].mxu0 %v1039
    %v1041 = vpop.f32.mrb[0].mxu0
    %v1042 = vadd.f32 %v938, %v1041
    %v1043 = vpop.f32.mrb[0].mxu0
    %1044 = vdwg.mxu0
    %1045 = vmatprep.subr.mxu0 0.0
    %v1046 = vand.u32 %v682, 4294901760
    %1047 = vmatpush1.msra.mxu0 %v1046
    %1048 = vmatprep.subr.mxu0 0.0
    %v1049 = vand.u32 %v683, 4294901760
    %1050 = vmatpush1.msra.mxu0 %v1049
    %1051 = vmatprep.subr.mxu0 0.0
    %v1052 = vand.u32 %v684, 4294901760
    %1053 = vmatpush1.msra.mxu0 %v1052
    %1054 = vmatprep.subr.mxu0 0.0
    %v1055 = vand.u32 %v685, 4294901760
    %1056 = vmatpush1.msra.mxu0 %v1055
    %1057 = vmatprep.subr.mxu0 0.0
    %v1058 = vand.u32 %v686, 4294901760
    %1059 = vmatpush1.msra.mxu0 %v1058
    %1060 = vmatprep.subr.mxu0 0.0
    %v1061 = vand.u32 %v687, 4294901760
    %1062 = vmatpush1.msra.mxu0 %v1061
    %1063 = vmatprep.subr.mxu0 0.0
    %v1064 = vand.u32 %v688, 4294901760
    %1065 = vmatpush1.msra.mxu0 %v1064
    %1066 = vmatprep.subr.mxu0 0.0
    %v1067 = vand.u32 %v689, 4294901760
    %1068 = vmatpush1.msra.mxu0 %v1067
    %1069 = vmatprep.subr.mxu0 0.0
    %v1070 = vand.u32 %v690, 4294901760
    %1071 = vmatpush1.msra.mxu0 %v1070
    %1072 = vmatprep.subr.mxu0 0.0
    %v1073 = vand.u32 %v691, 4294901760
    %1074 = vmatpush1.msra.mxu0 %v1073
    %1075 = vmatprep.subr.mxu0 0.0
    %v1076 = vand.u32 %v692, 4294901760
    %1077 = vmatpush1.msra.mxu0 %v1076
    %1078 = vmatprep.subr.mxu0 0.0
    %v1079 = vand.u32 %v693, 4294901760
    %1080 = vmatpush1.msra.mxu0 %v1079
    %1081 = vmatprep.subr.mxu0 0.0
    %v1082 = vand.u32 %v694, 4294901760
    %1083 = vmatpush1.msra.mxu0 %v1082
    %1084 = vmatprep.subr.mxu0 0.0
    %v1085 = vand.u32 %v695, 4294901760
    %1086 = vmatpush1.msra.mxu0 %v1085
    %1087 = vmatprep.subr.mxu0 0.0
    %v1088 = vand.u32 %v696, 4294901760
    %1089 = vmatpush1.msra.mxu0 %v1088
    %1090 = vmatprep.subr.mxu0 0.0
    %v1091 = vand.u32 %v697, 4294901760
    %1092 = vmatpush1.msra.mxu0 %v1091
    %1093 = vmatprep.subr.mxu0 0.0
    %1094 = vmatpush1.msra.mxu0 0.0
    %1095 = vmatprep.subr.mxu0 0.0
    %1096 = vmatpush1.msra.mxu0 0.0
    %1097 = vmatprep.subr.mxu0 0.0
    %1098 = vmatpush1.msra.mxu0 0.0
    %1099 = vmatprep.subr.mxu0 0.0
    %1100 = vmatpush1.msra.mxu0 0.0
    %1101 = vmatprep.subr.mxu0 0.0
    %1102 = vmatpush1.msra.mxu0 0.0
    %1103 = vmatprep.subr.mxu0 0.0
    %1104 = vmatpush1.msra.mxu0 0.0
    %1105 = vmatprep.subr.mxu0 0.0
    %1106 = vmatpush1.msra.mxu0 0.0
    %1107 = vmatprep.subr.mxu0 0.0
    %1108 = vmatpush1.msra.mxu0 0.0
    %1109 = vmatprep.subr.mxu0 0.0
    %1110 = vmatpush1.msra.mxu0 0.0
    %1111 = vmatprep.subr.mxu0 0.0
    %1112 = vmatpush1.msra.mxu0 0.0
    %1113 = vmatprep.subr.mxu0 0.0
    %1114 = vmatpush1.msra.mxu0 0.0
    %1115 = vmatprep.subr.mxu0 0.0
    %1116 = vmatpush1.msra.mxu0 0.0
    %1117 = vmatprep.subr.mxu0 0.0
    %1118 = vmatpush1.msra.mxu0 0.0
    %1119 = vmatprep.subr.mxu0 0.0
    %1120 = vmatpush1.msra.mxu0 0.0
    %1121 = vmatprep.subr.mxu0 0.0
    %1122 = vmatpush1.msra.mxu0 0.0
    %1123 = vmatprep.subr.mxu0 0.0
    %1124 = vmatpush1.msra.mxu0 0.0
    %1125 = vmatprep.mubr.f32.mxu0 0.0
    %v1126 = vand.u32 %v681, 4294901760
    %v1127 = vsub.f32 %v681, %v1126
    %v1128 = vand.u32 %v1127, 4294901760
    %1129 = vmatmul.mubr.f32.gmra.mrb[0].mxu0 %v1128
    %v1130 = vpop.f32.mrb[0].mxu0
    %v1131 = vadd.f32 %v1042, %v1130
    %v1132 = vpop.f32.mrb[0].mxu0
    %1133 = vdwg.mxu0
    %1134 = vmatprep.subr.mxu0 0.0
    %v1135 = vand.u32 %v682, 4294901760
    %v1136 = vsub.f32 %v682, %v1135
    %v1137 = vand.u32 %v1136, 4294901760
    %1138 = vmatpush1.msra.mxu0 %v1137
    %1139 = vmatprep.subr.mxu0 0.0
    %v1140 = vand.u32 %v683, 4294901760
    %v1141 = vsub.f32 %v683, %v1140
    %v1142 = vand.u32 %v1141, 4294901760
    %1143 = vmatpush1.msra.mxu0 %v1142
    %1144 = vmatprep.subr.mxu0 0.0
    %v1145 = vand.u32 %v684, 4294901760
    %v1146 = vsub.f32 %v684, %v1145
    %v1147 = vand.u32 %v1146, 4294901760
    %1148 = vmatpush1.msra.mxu0 %v1147
    %1149 = vmatprep.subr.mxu0 0.0
    %v1150 = vand.u32 %v685, 4294901760
    %v1151 = vsub.f32 %v685, %v1150
    %v1152 = vand.u32 %v1151, 4294901760
    %1153 = vmatpush1.msra.mxu0 %v1152
    %1154 = vmatprep.subr.mxu0 0.0
    %v1155 = vand.u32 %v686, 4294901760
    %v1156 = vsub.f32 %v686, %v1155
    %v1157 = vand.u32 %v1156, 4294901760
    %1158 = vmatpush1.msra.mxu0 %v1157
    %1159 = vmatprep.subr.mxu0 0.0
    %v1160 = vand.u32 %v687, 4294901760
    %v1161 = vsub.f32 %v687, %v1160
    %v1162 = vand.u32 %v1161, 4294901760
    %1163 = vmatpush1.msra.mxu0 %v1162
    %1164 = vmatprep.subr.mxu0 0.0
    %v1165 = vand.u32 %v688, 4294901760
    %v1166 = vsub.f32 %v688, %v1165
    %v1167 = vand.u32 %v1166, 4294901760
    %1168 = vmatpush1.msra.mxu0 %v1167
    %1169 = vmatprep.subr.mxu0 0.0
    %v1170 = vand.u32 %v689, 4294901760
    %v1171 = vsub.f32 %v689, %v1170
    %v1172 = vand.u32 %v1171, 4294901760
    %1173 = vmatpush1.msra.mxu0 %v1172
    %1174 = vmatprep.subr.mxu0 0.0
    %v1175 = vand.u32 %v690, 4294901760
    %v1176 = vsub.f32 %v690, %v1175
    %v1177 = vand.u32 %v1176, 4294901760
    %1178 = vmatpush1.msra.mxu0 %v1177
    %1179 = vmatprep.subr.mxu0 0.0
    %v1180 = vand.u32 %v691, 4294901760
    %v1181 = vsub.f32 %v691, %v1180
    %v1182 = vand.u32 %v1181, 4294901760
    %1183 = vmatpush1.msra.mxu0 %v1182
    %1184 = vmatprep.subr.mxu0 0.0
    %v1185 = vand.u32 %v692, 4294901760
    %v1186 = vsub.f32 %v692, %v1185
    %v1187 = vand.u32 %v1186, 4294901760
    %1188 = vmatpush1.msra.mxu0 %v1187
    %1189 = vmatprep.subr.mxu0 0.0
    %v1190 = vand.u32 %v693, 4294901760
    %v1191 = vsub.f32 %v693, %v1190
    %v1192 = vand.u32 %v1191, 4294901760
    %1193 = vmatpush1.msra.mxu0 %v1192
    %1194 = vmatprep.subr.mxu0 0.0
    %v1195 = vand.u32 %v694, 4294901760
    %v1196 = vsub.f32 %v694, %v1195
    %v1197 = vand.u32 %v1196, 4294901760
    %1198 = vmatpush1.msra.mxu0 %v1197
    %1199 = vmatprep.subr.mxu0 0.0
    %v1200 = vand.u32 %v695, 4294901760
    %v1201 = vsub.f32 %v695, %v1200
    %v1202 = vand.u32 %v1201, 4294901760
    %1203 = vmatpush1.msra.mxu0 %v1202
    %1204 = vmatprep.subr.mxu0 0.0
    %v1205 = vand.u32 %v696, 4294901760
    %v1206 = vsub.f32 %v696, %v1205
    %v1207 = vand.u32 %v1206, 4294901760
    %1208 = vmatpush1.msra.mxu0 %v1207
    %1209 = vmatprep.subr.mxu0 0.0
    %v1210 = vand.u32 %v697, 4294901760
    %v1211 = vsub.f32 %v697, %v1210
    %v1212 = vand.u32 %v1211, 4294901760
    %1213 = vmatpush1.msra.mxu0 %v1212
    %1214 = vmatprep.subr.mxu0 0.0
    %1215 = vmatpush1.msra.mxu0 0.0
    %1216 = vmatprep.subr.mxu0 0.0
    %1217 = vmatpush1.msra.mxu0 0.0
    %1218 = vmatprep.subr.mxu0 0.0
    %1219 = vmatpush1.msra.mxu0 0.0
    %1220 = vmatprep.subr.mxu0 0.0
    %1221 = vmatpush1.msra.mxu0 0.0
    %1222 = vmatprep.subr.mxu0 0.0
    %1223 = vmatpush1.msra.mxu0 0.0
    %1224 = vmatprep.subr.mxu0 0.0
    %1225 = vmatpush1.msra.mxu0 0.0
    %1226 = vmatprep.subr.mxu0 0.0
    %1227 = vmatpush1.msra.mxu0 0.0
    %1228 = vmatprep.subr.mxu0 0.0
    %1229 = vmatpush1.msra.mxu0 0.0
    %1230 = vmatprep.subr.mxu0 0.0
    %1231 = vmatpush1.msra.mxu0 0.0
    %1232 = vmatprep.subr.mxu0 0.0
    %1233 = vmatpush1.msra.mxu0 0.0
    %1234 = vmatprep.subr.mxu0 0.0
    %1235 = vmatpush1.msra.mxu0 0.0
    %1236 = vmatprep.subr.mxu0 0.0
    %1237 = vmatpush1.msra.mxu0 0.0
    %1238 = vmatprep.subr.mxu0 0.0
    %1239 = vmatpush1.msra.mxu0 0.0
    %1240 = vmatprep.subr.mxu0 0.0
    %1241 = vmatpush1.msra.mxu0 0.0
    %1242 = vmatprep.subr.mxu0 0.0
    %1243 = vmatpush1.msra.mxu0 0.0
    %1244 = vmatprep.subr.mxu0 0.0
    %1245 = vmatpush1.msra.mxu0 0.0
    %1246 = vmatprep.mubr.f32.mxu0 0.0
    %v1247 = vand.u32 %v681, 4294901760
    %1248 = vmatmul.mubr.f32.gmra.mrb[0].mxu0 %v1247
    %v1249 = vpop.f32.mrb[0].mxu0
    %v1250 = vadd.f32 %v1131, %v1249
    %v1251 = vpop.f32.mrb[0].mxu0
    %1252 = vdwg.mxu0
    %1253 = vmatprep.subr.mxu0 0.0
    %v1254 = vand.u32 %v682, 4294901760
    %1255 = vmatpush1.msra.mxu0 %v1254
    %1256 = vmatprep.subr.mxu0 0.0
    %v1257 = vand.u32 %v683, 4294901760
    %1258 = vmatpush1.msra.mxu0 %v1257
    %1259 = vmatprep.subr.mxu0 0.0
    %v1260 = vand.u32 %v684, 4294901760
    %1261 = vmatpush1.msra.mxu0 %v1260
    %1262 = vmatprep.subr.mxu0 0.0
    %v1263 = vand.u32 %v685, 4294901760
    %1264 = vmatpush1.msra.mxu0 %v1263
    %1265 = vmatprep.subr.mxu0 0.0
    %v1266 = vand.u32 %v686, 4294901760
    %1267 = vmatpush1.msra.mxu0 %v1266
    %1268 = vmatprep.subr.mxu0 0.0
    %v1269 = vand.u32 %v687, 4294901760
    %1270 = vmatpush1.msra.mxu0 %v1269
    %1271 = vmatprep.subr.mxu0 0.0
    %v1272 = vand.u32 %v688, 4294901760
    %1273 = vmatpush1.msra.mxu0 %v1272
    %1274 = vmatprep.subr.mxu0 0.0
    %v1275 = vand.u32 %v689, 4294901760
    %1276 = vmatpush1.msra.mxu0 %v1275
    %1277 = vmatprep.subr.mxu0 0.0
    %v1278 = vand.u32 %v690, 4294901760
    %1279 = vmatpush1.msra.mxu0 %v1278
    %1280 = vmatprep.subr.mxu0 0.0
    %v1281 = vand.u32 %v691, 4294901760
    %1282 = vmatpush1.msra.mxu0 %v1281
    %1283 = vmatprep.subr.mxu0 0.0
    %v1284 = vand.u32 %v692, 4294901760
    %1285 = vmatpush1.msra.mxu0 %v1284
    %1286 = vmatprep.subr.mxu0 0.0
    %v1287 = vand.u32 %v693, 4294901760
    %1288 = vmatpush1.msra.mxu0 %v1287
    %1289 = vmatprep.subr.mxu0 0.0
    %v1290 = vand.u32 %v694, 4294901760
    %1291 = vmatpush1.msra.mxu0 %v1290
    %1292 = vmatprep.subr.mxu0 0.0
    %v1293 = vand.u32 %v695, 4294901760
    %1294 = vmatpush1.msra.mxu0 %v1293
    %1295 = vmatprep.subr.mxu0 0.0
    %v1296 = vand.u32 %v696, 4294901760
    %1297 = vmatpush1.msra.mxu0 %v1296
    %1298 = vmatprep.subr.mxu0 0.0
    %v1299 = vand.u32 %v697, 4294901760
    %1300 = vmatpush1.msra.mxu0 %v1299
    %1301 = vmatprep.subr.mxu0 0.0
    %1302 = vmatpush1.msra.mxu0 0.0
    %1303 = vmatprep.subr.mxu0 0.0
    %1304 = vmatpush1.msra.mxu0 0.0
    %1305 = vmatprep.subr.mxu0 0.0
    %1306 = vmatpush1.msra.mxu0 0.0
    %1307 = vmatprep.subr.mxu0 0.0
    %1308 = vmatpush1.msra.mxu0 0.0
    %1309 = vmatprep.subr.mxu0 0.0
    %1310 = vmatpush1.msra.mxu0 0.0
    %1311 = vmatprep.subr.mxu0 0.0
    %1312 = vmatpush1.msra.mxu0 0.0
    %1313 = vmatprep.subr.mxu0 0.0
    %1314 = vmatpush1.msra.mxu0 0.0
    %1315 = vmatprep.subr.mxu0 0.0
    %1316 = vmatpush1.msra.mxu0 0.0
    %1317 = vmatprep.subr.mxu0 0.0
    %1318 = vmatpush1.msra.mxu0 0.0
    %1319 = vmatprep.subr.mxu0 0.0
    %1320 = vmatpush1.msra.mxu0 0.0
    %1321 = vmatprep.subr.mxu0 0.0
    %1322 = vmatpush1.msra.mxu0 0.0
    %1323 = vmatprep.subr.mxu0 0.0
    %1324 = vmatpush1.msra.mxu0 0.0
    %1325 = vmatprep.subr.mxu0 0.0
    %1326 = vmatpush1.msra.mxu0 0.0
    %1327 = vmatprep.subr.mxu0 0.0
    %1328 = vmatpush1.msra.mxu0 0.0
    %1329 = vmatprep.subr.mxu0 0.0
    %1330 = vmatpush1.msra.mxu0 0.0
    %1331 = vmatprep.subr.mxu0 0.0
    %1332 = vmatpush1.msra.mxu0 0.0
    %1333 = vmatprep.mubr.f32.mxu0 0.0
    %v1334 = vand.u32 %v681, 4294901760
    %1335 = vmatmul.mubr.f32.gmra.mrb[0].mxu0 %v1334
    %v1336 = vpop.f32.mrb[0].mxu0
    %v1337 = vadd.f32 %v1250, %v1336
    %v1338 = vpop.f32.mrb[0].mxu0
    %1339 = vdwg.mxu0
    %v1340 = vmax.f32 %v1337, 0.0
    %v1341 = vmin.f32 %v1340, 6.0
    %v1342 = vmul.f32 %v1341, 50.0
    %v1343 = vrcp.pop 6.0
    %v1344 = vmul.f32 %v1342, %v1343
    %v1345 = vround.ne.pseudo %v1344
    %1347 = vrot.lane.b32.xlu0 %v1337, 8
    %v1348 = vpop.permute.xlu0 %1347
    %vm1350 = vcmp.gt.f32.partialorder %v1337, %v1348
    %v1351 = vsel %vm1350, 1.0, 0.0
    %v1352 = vsel %vm1350, %v1337, %v1348
    %1354 = vrot.lane.b32.xlu0 %v1352, 8
    %v1355 = vpop.permute.xlu0 %1354
    %vm1357 = vcmp.gt.f32.partialorder %v1337, %v1355
    %1359 = vrot.lane.b32.xlu0 %v1351, 8
    %v1360 = vpop.permute.xlu0 %1359
    %v1362 = vsel %vm1357, 2.0, %v1360
    %v1363 = vsel %vm1357, %v1337, %v1355
    %1365 = vrot.lane.b32.xlu0 %v1363, 8
    %v1366 = vpop.permute.xlu0 %1365
    %vm1368 = vcmp.gt.f32.partialorder %v1337, %v1366
    %1370 = vrot.lane.b32.xlu0 %v1362, 8
    %v1371 = vpop.permute.xlu0 %1370
    %v1373 = vsel %vm1368, 3.0, %v1371
    %1375 = vrot.lane.b32.xlu0 %v1373, 104
    %v1376 = vpop.permute.xlu0 %1375
    %vm1378 = vcmask 64512
    %v1379 = vsel %vm1378, %v1345, %v1376
    %vm1380 = vcmask 122880
    %1381 = vst.msk [vmem:[#allocation2] sm:$0x1] %vm1380, %v1379
    // Predicated region
    $region22: #{tpu_custom_call.1} parent=1 // pred_check
      _
    $region23: #{tpu_custom_call.1} parent=1 // pred_check_branch
      %1383 = sbr.rel (0) target = $region25
    $region24: #{tpu_custom_call.1} parent=1 // pred_region
      %s1385 = ssub.s32 16, 16
      %1386 = vsyncadd [#allocation3], %s1385
      %s1388 = sshll.u32 [#allocation2], 4
      %s1389 = int_to_ptr.vmem [resolvable:$true] %s1388
      %1391 = dma.vmem_to_hbm [thread:$0]  %s1389, 16, %s5, [#allocation3]
    $region25: #{tpu_custom_call.1} parent=1 // pred_fallthru
      _
    // Predicated region
    $region26: #{tpu_custom_call.1} parent=1 // pred_check
      _
    $region27: #{tpu_custom_call.1} parent=1 // pred_check_branch
      %1393 = sbr.rel (0) target = $region29
    $region28: #{tpu_custom_call.1} parent=1 // pred_region
      %1394 = dma.done [#allocation3], 16
    $region29: #{tpu_custom_call.1} parent=1 // pred_fallthru
      _
    %1395 = vsyncpa [#allocation3], 1

</llo_original>
